<compile_context>
chip_gen: v5e
topology: v5e:2x2
jax: 0.10.0
libtpu: 0.0.40
codegen_flags: <defaults>
</compile_context>

<pallas_src>
import jax
import jax.numpy as jnp
from jax import lax
from jax.experimental import pallas as pl
from jax.experimental.pallas import tpu as pltpu

EPS = 1e-5
LANE = 128
VMEM_LIMIT_BYTES = 48 * 1024 * 1024   # safe scoped limit on v5e/v6e (128 MiB) and v7x (64 MiB)


def _round_up(x, m):
    return (x + m - 1) // m * m


def _choose_tile_m(m, k_pad, c_pad):
    # Size TILE_M so the double-buffered working set (2x bf16 patch tile +
    # 2x f32 conv-out tile) stays well inside the scoped-VMEM budget on every
    # TPU generation (v7x has only 64 MiB physical VMEM per TensorCore).
    budget = VMEM_LIMIT_BYTES // 2
    bytes_per_row = 2 * (k_pad * 2) + 2 * (c_pad * 4)
    t = budget // bytes_per_row
    t = max(16, min(2048, t))
    t = (t // 16) * 16                      # bf16 sublane-packing friendly
    return min(t, _round_up(m, 16))


def _conv_stats_kernel(p_ref, w_ref, y_ref, psum_ref, psumsq_ref):
    # Conv tile: bf16 x bf16 -> f32 accumulation on the MXU.
    y = jnp.dot(p_ref[...], w_ref[...], preferred_element_type=jnp.float32)
    y_ref[...] = y
    # Per-channel partial sums for BatchNorm, done on the MXU instead of a
    # cross-sublane VPU/XLU reduction (8 identical rows keep shapes tile-friendly).
    ones = jnp.ones((8, y.shape[0]), dtype=jnp.float32)
    s = jnp.dot(ones, y, preferred_element_type=jnp.float32)        # (8, Cp)
    sq = jnp.dot(ones, y * y, preferred_element_type=jnp.float32)   # (8, Cp)
    psum_ref[...] = s[None, :, :]
    psumsq_ref[...] = sq[None, :, :]


def _bn_apply_kernel(y_ref, scale_ref, shift_ref, o_ref):
    # Folded BatchNorm: a single FMA per element.
    o_ref[...] = y_ref[...] * scale_ref[...] + shift_ref[...]


def conv_bn2d(x_nchw, weight_oihw, gamma, beta,
              kernel_size=(3, 3), stride=(1, 1), padding=(1, 1)):
    N, Cin, H, W = x_nchw.shape
    Cout = weight_oihw.shape[0]
    KH, KW = kernel_size
    sh, sw = stride
    ph, pw = padding

    Ho = (H + 2 * ph - KH) // sh + 1
    Wo = (W + 2 * pw - KW) // sw + 1
    M = N * Ho * Wo
    K = KH * KW * Cin
    Kp = _round_up(K, LANE)
    Cp = _round_up(Cout, LANE)
    tile_m = _choose_tile_m(M, Kp, Cp)
    M_pad = _round_up(M, tile_m)
    num_tiles = M_pad // tile_m

    # ---- glue: NCHW -> NHWC, zero-pad, im2col (tap order (kh, kw, cin)) ----
    x = jnp.transpose(x_nchw, (0, 2, 3, 1)).astype(jnp.float32)
    xp = jnp.pad(x, ((0, 0), (ph, ph), (pw, pw), (0, 0)))
    taps = []
    for kh in range(KH):
        for kw in range(KW):
            taps.append(xp[:, kh:kh + sh * Ho:sh, kw:kw + sw * Wo:sw, :])
    patches = jnp.concatenate(taps, axis=-1).reshape(M, K)
    patches = jnp.pad(patches, ((0, M_pad - M), (0, Kp - K))).astype(jnp.bfloat16)

    # Weight OIHW -> (kh, kw, cin, cout) -> (K, Cout); pad/cast to match patches.
    w2 = jnp.transpose(weight_oihw.astype(jnp.float32), (2, 3, 1, 0)).reshape(K, Cout)
    w2 = jnp.pad(w2, ((0, Kp - K), (0, Cp - Cout))).astype(jnp.bfloat16)

    # ---- pass 1: tiled conv matmul + per-tile partial channel sums ----
    conv_out, psum, psumsq = pl.pallas_call(
        _conv_stats_kernel,
        out_shape=(
            jax.ShapeDtypeStruct((M_pad, Cp), jnp.float32),
            jax.ShapeDtypeStruct((num_tiles, 8, Cp), jnp.float32),
            jax.ShapeDtypeStruct((num_tiles, 8, Cp), jnp.float32),
        ),
        grid=(num_tiles,),
        in_specs=[
            pl.BlockSpec((tile_m, Kp), lambda i: (i, 0)),
            pl.BlockSpec((Kp, Cp), lambda i: (0, 0)),
        ],
        out_specs=(
            pl.BlockSpec((tile_m, Cp), lambda i: (i, 0)),
            pl.BlockSpec((1, 8, Cp), lambda i: (i, 0, 0)),
            pl.BlockSpec((1, 8, Cp), lambda i: (i, 0, 0)),
        ),
        compiler_params=pltpu.CompilerParams(
            dimension_semantics=("parallel",),
            vmem_limit_bytes=VMEM_LIMIT_BYTES),
        cost_estimate=pl.CostEstimate(
            flops=int(2 * M_pad * Kp * Cp + 32 * M_pad * Cp),
            transcendentals=0,
            bytes_accessed=int(M_pad * Kp * 2 + Kp * Cp * 2
                               + M_pad * Cp * 4 + 2 * num_tiles * 8 * Cp * 4)),
    )(patches, w2)

    # ---- BatchNorm statistics (training mode: biased variance over N*Ho*Wo) ----
    count = jnp.float32(M)                         # true rows; zero padding adds 0
    ch_sum = psum[:, 0, :].sum(axis=0)             # (Cp,)
    ch_sumsq = psumsq[:, 0, :].sum(axis=0)         # (Cp,)
    mean = ch_sum / count
    var = jnp.maximum(ch_sumsq / count - mean * mean, 0.0)
    inv = lax.rsqrt(var + EPS)
    gamma_p = jnp.pad(gamma.astype(jnp.float32), (0, Cp - Cout))
    beta_p = jnp.pad(beta.astype(jnp.float32), (0, Cp - Cout))
    scale = (gamma_p * inv).reshape(1, Cp)
    shift = (beta_p - mean * gamma_p * inv).reshape(1, Cp)

    # ---- pass 2: in-place folded normalize (y*scale + shift), tiled over M ----
    out = pl.pallas_call(
        _bn_apply_kernel,
        out_shape=jax.ShapeDtypeStruct((M_pad, Cp), jnp.float32),
        grid=(num_tiles,),
        in_specs=[
            pl.BlockSpec((tile_m, Cp), lambda i: (i, 0)),
            pl.BlockSpec((1, Cp), lambda i: (0, 0)),
            pl.BlockSpec((1, Cp), lambda i: (0, 0)),
        ],
        out_specs=pl.BlockSpec((tile_m, Cp), lambda i: (i, 0)),
        input_output_aliases={0: 0},
        compiler_params=pltpu.CompilerParams(
            dimension_semantics=("parallel",),
            vmem_limit_bytes=VMEM_LIMIT_BYTES),
        cost_estimate=pl.CostEstimate(
            flops=int(2 * M_pad * Cp),
            transcendentals=0,
            bytes_accessed=int(2 * M_pad * Cp * 4 + 2 * Cp * 4)),
    )(conv_out, scale, shift)

    # Slice off padding, back to NCHW.
    out = out[:M, :Cout].reshape(N, Ho, Wo, Cout)
    return jnp.transpose(out, (0, 3, 1, 2))


def conv_bn2d_reference(x_nchw, weight_oihw, gamma, beta):
    """Pure-JAX f32 reference (conv + training-mode batchnorm) for verification."""
    y = lax.conv_general_dilated(
        x_nchw.astype(jnp.float32), weight_oihw.astype(jnp.float32),
        window_strides=(1, 1), padding=((1, 1), (1, 1)),
        dimension_numbers=("NCHW", "OIHW", "NCHW"))
    mean = jnp.mean(y, axis=(0, 2, 3), keepdims=True)
    var = jnp.mean(jnp.square(y - mean), axis=(0, 2, 3), keepdims=True)
    g = gamma.reshape(1, -1, 1, 1)
    b = beta.reshape(1, -1, 1, 1)
    return (y - mean) * lax.rsqrt(var + EPS) * g + b


if __name__ == "__main__":
    key = jax.random.PRNGKey(0)
    kx, kw = jax.random.split(key)

    N, Cin, Cout, H, W = 2, 4, 8, 16, 16
    x = jax.random.normal(kx, (N, Cin, H, W), dtype=jnp.float32)
    # Deterministic synthetic parameters (shapes per nn.Conv2d / nn.BatchNorm2d init).
    weight = 0.1 * jax.random.normal(kw, (Cout, Cin, 3, 3), dtype=jnp.float32)
    gamma = jnp.ones((Cout,), dtype=jnp.float32)   # BatchNorm2d weight init
    beta = jnp.zeros((Cout,), dtype=jnp.float32)   # BatchNorm2d bias init

    conv_bn = jax.jit(conv_bn2d)
    out = jax.block_until_ready(conv_bn(x, weight, gamma, beta))
    assert out.shape == (N, Cout, H, W), out.shape

    # Tight check vs a reference fed the same bf16-rounded conv inputs (the kernel
    # feeds bf16 to the MXU but accumulates and normalizes in f32).
    xq = x.astype(jnp.bfloat16).astype(jnp.float32)
    wq = weight.astype(jnp.bfloat16).astype(jnp.float32)
    ref_matched = conv_bn2d_reference(xq, wq, gamma, beta)
    assert jnp.allclose(out, ref_matched, rtol=1e-3, atol=1e-3), \
        float(jnp.max(jnp.abs(out - ref_matched)))

    # Loose sanity check vs the pure-f32 reference (difference is bf16 input rounding).
    ref_f32 = conv_bn2d_reference(x, weight, gamma, beta)
    assert jnp.allclose(out, ref_f32, rtol=1e-1, atol=1e-1), \
        float(jnp.max(jnp.abs(out - ref_f32)))

    print("KERNEL_OK")
</pallas_src>

<mosaic_0001>
module attributes {stable_mosaic.version = 11 : i64} {
  func.func @_conv_stats_kernel(%arg0: i32, %arg1: memref<512x128xbf16, #tpu.memory_space<vmem>>, %arg2: memref<128x128xbf16, #tpu.memory_space<vmem>>, %arg3: memref<512x128xf32, #tpu.memory_space<vmem>>, %arg4: memref<1x8x128xf32, #tpu.memory_space<vmem>>, %arg5: memref<1x8x128xf32, #tpu.memory_space<vmem>>) attributes {dimension_semantics = [#tpu.dimension_semantics<parallel>], iteration_bounds = array<i64: 1>, scalar_prefetch = 0 : i64, scratch_operands = 0 : i64, tpu.core_type = #tpu.core_type<tc>, window_params = [{transform_indices = @transform_0, window_bounds = array<i64: 512, 128>}, {pipeline_mode = #tpu.pipeline_mode<synchronous>, transform_indices = @transform_1, window_bounds = array<i64: 128, 128>}, {transform_indices = @transform_2, window_bounds = array<i64: 512, 128>}, {transform_indices = @transform_3, window_bounds = array<i64: 1, 8, 128>}, {transform_indices = @transform_4, window_bounds = array<i64: 1, 8, 128>}]} {
    %c0 = arith.constant 0 : index
    %c0_0 = arith.constant 0 : index
    %0 = vector.load %arg1[%c0, %c0_0] : memref<512x128xbf16, #tpu.memory_space<vmem>>, vector<512x128xbf16>
    %c0_1 = arith.constant 0 : index
    %c0_2 = arith.constant 0 : index
    %1 = vector.load %arg2[%c0_1, %c0_2] : memref<128x128xbf16, #tpu.memory_space<vmem>>, vector<128x128xbf16>
    %cst = arith.constant dense<0.000000e+00> : vector<512x128xf32>
    %2 = tpu.matmul %0, %1, %cst {dimension_numbers = #tpu.dot_dimension_numbers<[1], [0], [0], [1], [0, 0, 1, 1], [], []>} : vector<512x128xbf16>, vector<128x128xbf16>, vector<512x128xf32> -> vector<512x128xf32>
    %c0_3 = arith.constant 0 : index
    %c0_4 = arith.constant 0 : index
    %3 = vector.load %arg3[%c0_3, %c0_4] : memref<512x128xf32, #tpu.memory_space<vmem>>, vector<512x128xf32>
    tpu.vector_store %arg3[%c0_3, %c0_4], %2 {strides = array<i32>} : memref<512x128xf32, #tpu.memory_space<vmem>>, vector<512x128xf32>,
    %cst_5 = arith.constant 1.000000e+00 : f32
    %4 = vector.broadcast %cst_5 : f32 to vector<8x512xf32>
    %cst_6 = arith.constant dense<0.000000e+00> : vector<8x128xf32>
    %5 = tpu.matmul %4, %2, %cst_6 {dimension_numbers = #tpu.dot_dimension_numbers<[1], [0], [0], [1], [0, 0, 1, 1], [], []>} : vector<8x512xf32>, vector<512x128xf32>, vector<8x128xf32> -> vector<8x128xf32>
    %6 = arith.mulf %2, %2 : vector<512x128xf32>
    %cst_7 = arith.constant dense<0.000000e+00> : vector<8x128xf32>
    %7 = tpu.matmul %4, %6, %cst_7 {dimension_numbers = #tpu.dot_dimension_numbers<[1], [0], [0], [1], [0, 0, 1, 1], [], []>} : vector<8x512xf32>, vector<512x128xf32>, vector<8x128xf32> -> vector<8x128xf32>
    %8 = vector.shape_cast %5 : vector<8x128xf32> to vector<1x8x128xf32>
    %c0_8 = arith.constant 0 : index
    %c0_9 = arith.constant 0 : index
    %c0_10 = arith.constant 0 : index
    %9 = vector.load %arg4[%c0_8, %c0_9, %c0_10] : memref<1x8x128xf32, #tpu.memory_space<vmem>>, vector<1x8x128xf32>
    tpu.vector_store %arg4[%c0_8, %c0_9, %c0_10], %8 {strides = array<i32>} : memref<1x8x128xf32, #tpu.memory_space<vmem>>, vector<1x8x128xf32>,
    %10 = vector.shape_cast %7 : vector<8x128xf32> to vector<1x8x128xf32>
    %c0_11 = arith.constant 0 : index
    %c0_12 = arith.constant 0 : index
    %c0_13 = arith.constant 0 : index
    %11 = vector.load %arg5[%c0_11, %c0_12, %c0_13] : memref<1x8x128xf32, #tpu.memory_space<vmem>>, vector<1x8x128xf32>
    tpu.vector_store %arg5[%c0_11, %c0_12, %c0_13], %10 {strides = array<i32>} : memref<1x8x128xf32, #tpu.memory_space<vmem>>, vector<1x8x128xf32>,
    return
  }
  func.func @transform_0(%arg0: i32) -> (i32, i32) {
    %c0_i32 = arith.constant 0 : i32
    %c0_i32_0 = arith.constant 0 : i32
    return %arg0, %c0_i32 : i32, i32
  }
  func.func @transform_1(%arg0: i32) -> (i32, i32) {
    %c0_i32 = arith.constant 0 : i32
    %c0_i32_0 = arith.constant 0 : i32
    %c0_i32_1 = arith.constant 0 : i32
    return %c0_i32, %c0_i32_0 : i32, i32
  }
  func.func @transform_2(%arg0: i32) -> (i32, i32) {
    %c0_i32 = arith.constant 0 : i32
    %c0_i32_0 = arith.constant 0 : i32
    return %arg0, %c0_i32 : i32, i32
  }
  func.func @transform_3(%arg0: i32) -> (i32, i32, i32) {
    %c0_i32 = arith.constant 0 : i32
    %c0_i32_0 = arith.constant 0 : i32
    %c0_i32_1 = arith.constant 0 : i32
    return %arg0, %c0_i32, %c0_i32_0 : i32, i32, i32
  }
  func.func @transform_4(%arg0: i32) -> (i32, i32, i32) {
    %c0_i32 = arith.constant 0 : i32
    %c0_i32_0 = arith.constant 0 : i32
    %c0_i32_1 = arith.constant 0 : i32
    return %arg0, %c0_i32, %c0_i32_0 : i32, i32, i32
  }
}

module attributes {stable_mosaic.version = 11 : i64} {
  func.func @_bn_apply_kernel(%arg0: i32, %arg1: memref<512x128xf32, #tpu.memory_space<vmem>>, %arg2: memref<1x128xf32, #tpu.memory_space<vmem>>, %arg3: memref<1x128xf32, #tpu.memory_space<vmem>>, %arg4: memref<512x128xf32, #tpu.memory_space<vmem>>) attributes {dimension_semantics = [#tpu.dimension_semantics<parallel>], iteration_bounds = array<i64: 1>, scalar_prefetch = 0 : i64, scratch_operands = 0 : i64, tpu.core_type = #tpu.core_type<tc>, window_params = [{transform_indices = @transform_0, window_bounds = array<i64: 512, 128>}, {pipeline_mode = #tpu.pipeline_mode<synchronous>, transform_indices = @transform_1, window_bounds = array<i64: 1, 128>}, {pipeline_mode = #tpu.pipeline_mode<synchronous>, transform_indices = @transform_2, window_bounds = array<i64: 1, 128>}, {transform_indices = @transform_3, window_bounds = array<i64: 512, 128>}]} {
    %c0 = arith.constant 0 : index
    %c0_0 = arith.constant 0 : index
    %0 = vector.load %arg1[%c0, %c0_0] : memref<512x128xf32, #tpu.memory_space<vmem>>, vector<512x128xf32>
    %c0_1 = arith.constant 0 : index
    %c0_2 = arith.constant 0 : index
    %1 = vector.load %arg2[%c0_1, %c0_2] : memref<1x128xf32, #tpu.memory_space<vmem>>, vector<1x128xf32>
    %2 = vector.broadcast %1 : vector<1x128xf32> to vector<512x128xf32>
    %3 = arith.mulf %0, %2 : vector<512x128xf32>
    %c0_3 = arith.constant 0 : index
    %c0_4 = arith.constant 0 : index
    %4 = vector.load %arg3[%c0_3, %c0_4] : memref<1x128xf32, #tpu.memory_space<vmem>>, vector<1x128xf32>
    %5 = vector.broadcast %4 : vector<1x128xf32> to vector<512x128xf32>
    %6 = arith.addf %3, %5 : vector<512x128xf32>
    %c0_5 = arith.constant 0 : index
    %c0_6 = arith.constant 0 : index
    %7 = vector.load %arg4[%c0_5, %c0_6] : memref<512x128xf32, #tpu.memory_space<vmem>>, vector<512x128xf32>
    tpu.vector_store %arg4[%c0_5, %c0_6], %6 {strides = array<i32>} : memref<512x128xf32, #tpu.memory_space<vmem>>, vector<512x128xf32>,
    return
  }
  func.func @transform_0(%arg0: i32) -> (i32, i32) {
    %c0_i32 = arith.constant 0 : i32
    %c0_i32_0 = arith.constant 0 : i32
    return %arg0, %c0_i32 : i32, i32
  }
  func.func @transform_1(%arg0: i32) -> (i32, i32) {
    %c0_i32 = arith.constant 0 : i32
    %c0_i32_0 = arith.constant 0 : i32
    %c0_i32_1 = arith.constant 0 : i32
    return %c0_i32, %c0_i32_0 : i32, i32
  }
  func.func @transform_2(%arg0: i32) -> (i32, i32) {
    %c0_i32 = arith.constant 0 : i32
    %c0_i32_0 = arith.constant 0 : i32
    %c0_i32_1 = arith.constant 0 : i32
    return %c0_i32, %c0_i32_0 : i32, i32
  }
  func.func @transform_3(%arg0: i32) -> (i32, i32) {
    %c0_i32 = arith.constant 0 : i32
    %c0_i32_0 = arith.constant 0 : i32
    return %arg0, %c0_i32 : i32, i32
  }
}

</mosaic_0001>

<llo_original>
// kernel: conv_bn2d.3
$region0: #{conv_bn2d.3}
  #allocation0 [shape = 'u32[]', space=smem, size = 0x4, offset = 0x4, fixed_abs, tag = 'smem constant byte address 0x4 - core index']
  #allocation1 [shape = 'u32[72,128]{1,0:T(1,128)}', space=vmem, size = 0x9000, scoped, tag = 'internal scratch']
  %s0 = inlined_call_operand.vmem [shape: f32[512,128], index: 0, kind: input, shape index: {}, may-alias: {0,3}]
  %s1 = inlined_call_operand.vmem [shape: f32[1,128], index: 1, kind: input, shape index: {}]
  %s2 = inlined_call_operand.vmem [shape: f32[1,128], index: 2, kind: input, shape index: {}]
  %s3 = inlined_call_operand.vmem [shape: f32[512,128], index: 3, kind: output, shape index: {}, may-alias: {0,3}]
  %s4 = sld [smem:[#allocation0]]
  $region22: #{conv_bn2d.3} parent=0
    _
  %s6 = ssub.s32 1, %s4
  %s7 = scalar_select 0, %s6, %s4
  // Predicated region
  $region2: #{conv_bn2d.3} parent=0 // pred_check
    _
  $region3: #{conv_bn2d.3} parent=0 // pred_check_branch
    %9 = sbr.rel (0) target = $region5
  $region4: #{conv_bn2d.3} parent=0 // pred_region
    _
  $region5: #{conv_bn2d.3} parent=0 // pred_fallthru
    _
  // Predicated region
  $region6: #{conv_bn2d.3} parent=0 // pred_check
    _
  $region7: #{conv_bn2d.3} parent=0 // pred_check_branch
    %11 = sbr.rel (0) target = $region9
  $region8: #{conv_bn2d.3} parent=0 // pred_region
    _
  $region9: #{conv_bn2d.3} parent=0 // pred_fallthru
    _
  // Predicated region
  $region10: #{conv_bn2d.3} parent=0 // pred_check
    _
  $region11: #{conv_bn2d.3} parent=0 // pred_check_branch
    %13 = sbr.rel (0) target = $region13
  $region12: #{conv_bn2d.3} parent=0 // pred_region
    _
  $region13: #{conv_bn2d.3} parent=0 // pred_fallthru
    _
  %v14 = vld [vmem:[%s0] sm:$0xff]
  %v15 = vld [vmem:[%s0 + $0x8] sm:$0xff]
  %v16 = vld [vmem:[%s0 + $0x10] sm:$0xff]
  %v17 = vld [vmem:[%s0 + $0x18] sm:$0xff]
  %v18 = vld [vmem:[%s0 + $0x20] sm:$0xff]
  %v19 = vld [vmem:[%s0 + $0x28] sm:$0xff]
  %v20 = vld [vmem:[%s0 + $0x30] sm:$0xff]
  %v21 = vld [vmem:[%s0 + $0x38] sm:$0xff]
  %v22 = vld [vmem:[%s0 + $0x40] sm:$0xff]
  %v23 = vld [vmem:[%s0 + $0x48] sm:$0xff]
  %v24 = vld [vmem:[%s0 + $0x50] sm:$0xff]
  %v25 = vld [vmem:[%s0 + $0x58] sm:$0xff]
  %v26 = vld [vmem:[%s0 + $0x60] sm:$0xff]
  %v27 = vld [vmem:[%s0 + $0x68] sm:$0xff]
  %v28 = vld [vmem:[%s0 + $0x70] sm:$0xff]
  %v29 = vld [vmem:[%s0 + $0x78] sm:$0xff]
  %v30 = vld [vmem:[%s0 + $0x80] sm:$0xff]
  %v31 = vld [vmem:[%s0 + $0x88] sm:$0xff]
  %v32 = vld [vmem:[%s0 + $0x90] sm:$0xff]
  %v33 = vld [vmem:[%s0 + $0x98] sm:$0xff]
  %v34 = vld [vmem:[%s0 + $0xa0] sm:$0xff]
  %v35 = vld [vmem:[%s0 + $0xa8] sm:$0xff]
  %v36 = vld [vmem:[%s0 + $0xb0] sm:$0xff]
  %v37 = vld [vmem:[%s0 + $0xb8] sm:$0xff]
  %v38 = vld [vmem:[%s0 + $0xc0] sm:$0xff]
  %v39 = vld [vmem:[%s0 + $0xc8] sm:$0xff]
  %v40 = vld [vmem:[%s0 + $0xd0] sm:$0xff]
  %v41 = vld [vmem:[%s0 + $0xd8] sm:$0xff]
  %v42 = vld [vmem:[%s0 + $0xe0] sm:$0xff]
  %v43 = vld [vmem:[%s0 + $0xe8] sm:$0xff]
  %v44 = vld [vmem:[%s0 + $0xf0] sm:$0xff]
  %v45 = vld [vmem:[%s0 + $0xf8] sm:$0xff]
  %v46 = vld [vmem:[%s0 + $0x100] sm:$0xff]
  %v47 = vld [vmem:[%s0 + $0x108] sm:$0xff]
  %v48 = vld [vmem:[%s0 + $0x110] sm:$0xff]
  %v49 = vld [vmem:[%s0 + $0x118] sm:$0xff]
  %v50 = vld [vmem:[%s0 + $0x120] sm:$0xff]
  %v51 = vld [vmem:[%s0 + $0x128] sm:$0xff]
  %v52 = vld [vmem:[%s0 + $0x130] sm:$0xff]
  %v53 = vld [vmem:[%s0 + $0x138] sm:$0xff]
  %v54 = vld [vmem:[%s0 + $0x140] sm:$0xff]
  %v55 = vld [vmem:[%s0 + $0x148] sm:$0xff]
  %v56 = vld [vmem:[%s0 + $0x150] sm:$0xff]
  %v57 = vld [vmem:[%s0 + $0x158] sm:$0xff]
  %v58 = vld [vmem:[%s0 + $0x160] sm:$0xff]
  %v59 = vld [vmem:[%s0 + $0x168] sm:$0xff]
  %v60 = vld [vmem:[%s0 + $0x170] sm:$0xff]
  %v61 = vld [vmem:[%s0 + $0x178] sm:$0xff]
  %v62 = vld [vmem:[%s0 + $0x180] sm:$0xff]
  %v63 = vld [vmem:[%s0 + $0x188] sm:$0xff]
  %v64 = vld [vmem:[%s0 + $0x190] sm:$0xff]
  %v65 = vld [vmem:[%s0 + $0x198] sm:$0xff]
  %v66 = vld [vmem:[%s0 + $0x1a0] sm:$0xff]
  %v67 = vld [vmem:[%s0 + $0x1a8] sm:$0xff]
  %v68 = vld [vmem:[%s0 + $0x1b0] sm:$0xff]
  %v69 = vld [vmem:[%s0 + $0x1b8] sm:$0xff]
  %v70 = vld [vmem:[%s0 + $0x1c0] sm:$0xff]
  %v71 = vld [vmem:[%s0 + $0x1c8] sm:$0xff]
  %v72 = vld [vmem:[%s0 + $0x1d0] sm:$0xff]
  %v73 = vld [vmem:[%s0 + $0x1d8] sm:$0xff]
  %v74 = vld [vmem:[%s0 + $0x1e0] sm:$0xff]
  %v75 = vld [vmem:[%s0 + $0x1e8] sm:$0xff]
  %v76 = vld [vmem:[%s0 + $0x1f0] sm:$0xff]
  %v77 = vld [vmem:[%s0 + $0x1f8] sm:$0xff]
  %v78 = vld [vmem:[%s1] sm:$0x1]
  %v80 = vperm.slane %v78, 0
  %v82 = vmul.f32 %v14, %v80
  %v83 = vmul.f32 %v15, %v80
  %v84 = vmul.f32 %v16, %v80
  %v85 = vmul.f32 %v17, %v80
  %v86 = vmul.f32 %v18, %v80
  %v87 = vmul.f32 %v19, %v80
  %v88 = vmul.f32 %v20, %v80
  %v89 = vmul.f32 %v21, %v80
  %v90 = vmul.f32 %v22, %v80
  %v91 = vmul.f32 %v23, %v80
  %v92 = vmul.f32 %v24, %v80
  %v93 = vmul.f32 %v25, %v80
  %v94 = vmul.f32 %v26, %v80
  %v95 = vmul.f32 %v27, %v80
  %v96 = vmul.f32 %v28, %v80
  %v97 = vmul.f32 %v29, %v80
  %v98 = vmul.f32 %v30, %v80
  %v99 = vmul.f32 %v31, %v80
  %v100 = vmul.f32 %v32, %v80
  %v101 = vmul.f32 %v33, %v80
  %v102 = vmul.f32 %v34, %v80
  %v103 = vmul.f32 %v35, %v80
  %v104 = vmul.f32 %v36, %v80
  %v105 = vmul.f32 %v37, %v80
  %v106 = vmul.f32 %v38, %v80
  %v107 = vmul.f32 %v39, %v80
  %v108 = vmul.f32 %v40, %v80
  %v109 = vmul.f32 %v41, %v80
  %v110 = vmul.f32 %v42, %v80
  %v111 = vmul.f32 %v43, %v80
  %v112 = vmul.f32 %v44, %v80
  %v113 = vmul.f32 %v45, %v80
  %v114 = vmul.f32 %v46, %v80
  %v115 = vmul.f32 %v47, %v80
  %v116 = vmul.f32 %v48, %v80
  %v117 = vmul.f32 %v49, %v80
  %v118 = vmul.f32 %v50, %v80
  %v119 = vmul.f32 %v51, %v80
  %v120 = vmul.f32 %v52, %v80
  %v121 = vmul.f32 %v53, %v80
  %v122 = vmul.f32 %v54, %v80
  %v123 = vmul.f32 %v55, %v80
  %v124 = vmul.f32 %v56, %v80
  %v125 = vmul.f32 %v57, %v80
  %v126 = vmul.f32 %v58, %v80
  %v127 = vmul.f32 %v59, %v80
  %v128 = vmul.f32 %v60, %v80
  %v129 = vmul.f32 %v61, %v80
  %v130 = vmul.f32 %v62, %v80
  %v131 = vmul.f32 %v63, %v80
  %v132 = vmul.f32 %v64, %v80
  %v133 = vmul.f32 %v65, %v80
  %v134 = vmul.f32 %v66, %v80
  %v135 = vmul.f32 %v67, %v80
  %v136 = vmul.f32 %v68, %v80
  %v137 = vmul.f32 %v69, %v80
  %v138 = vmul.f32 %v70, %v80
  %v139 = vmul.f32 %v71, %v80
  %v140 = vmul.f32 %v72, %v80
  %v141 = vmul.f32 %v73, %v80
  %v142 = vmul.f32 %v74, %v80
  %v143 = vmul.f32 %v75, %v80
  %v144 = vmul.f32 %v76, %v80
  %v145 = vmul.f32 %v77, %v80
  %v146 = vld [vmem:[%s2] sm:$0x1]
  %v148 = vperm.slane %v146, 0
  %v150 = vadd.f32 %v82, %v148
  %v151 = vadd.f32 %v83, %v148
  %v152 = vadd.f32 %v84, %v148
  %v153 = vadd.f32 %v85, %v148
  %v154 = vadd.f32 %v86, %v148
  %v155 = vadd.f32 %v87, %v148
  %v156 = vadd.f32 %v88, %v148
  %v157 = vadd.f32 %v89, %v148
  %v158 = vadd.f32 %v90, %v148
  %v159 = vadd.f32 %v91, %v148
  %v160 = vadd.f32 %v92, %v148
  %v161 = vadd.f32 %v93, %v148
  %v162 = vadd.f32 %v94, %v148
  %v163 = vadd.f32 %v95, %v148
  %v164 = vadd.f32 %v96, %v148
  %v165 = vadd.f32 %v97, %v148
  %v166 = vadd.f32 %v98, %v148
  %v167 = vadd.f32 %v99, %v148
  %v168 = vadd.f32 %v100, %v148
  %v169 = vadd.f32 %v101, %v148
  %v170 = vadd.f32 %v102, %v148
  %v171 = vadd.f32 %v103, %v148
  %v172 = vadd.f32 %v104, %v148
  %v173 = vadd.f32 %v105, %v148
  %v174 = vadd.f32 %v106, %v148
  %v175 = vadd.f32 %v107, %v148
  %v176 = vadd.f32 %v108, %v148
  %v177 = vadd.f32 %v109, %v148
  %v178 = vadd.f32 %v110, %v148
  %v179 = vadd.f32 %v111, %v148
  %v180 = vadd.f32 %v112, %v148
  %v181 = vadd.f32 %v113, %v148
  %v182 = vadd.f32 %v114, %v148
  %v183 = vadd.f32 %v115, %v148
  %v184 = vadd.f32 %v116, %v148
  %v185 = vadd.f32 %v117, %v148
  %v186 = vadd.f32 %v118, %v148
  %v187 = vadd.f32 %v119, %v148
  %v188 = vadd.f32 %v120, %v148
  %v189 = vadd.f32 %v121, %v148
  %v190 = vadd.f32 %v122, %v148
  %v191 = vadd.f32 %v123, %v148
  %v192 = vadd.f32 %v124, %v148
  %v193 = vadd.f32 %v125, %v148
  %v194 = vadd.f32 %v126, %v148
  %v195 = vadd.f32 %v127, %v148
  %v196 = vadd.f32 %v128, %v148
  %v197 = vadd.f32 %v129, %v148
  %v198 = vadd.f32 %v130, %v148
  %v199 = vadd.f32 %v131, %v148
  %v200 = vadd.f32 %v132, %v148
  %v201 = vadd.f32 %v133, %v148
  %v202 = vadd.f32 %v134, %v148
  %v203 = vadd.f32 %v135, %v148
  %v204 = vadd.f32 %v136, %v148
  %v205 = vadd.f32 %v137, %v148
  %v206 = vadd.f32 %v138, %v148
  %v207 = vadd.f32 %v139, %v148
  %v208 = vadd.f32 %v140, %v148
  %v209 = vadd.f32 %v141, %v148
  %v210 = vadd.f32 %v142, %v148
  %v211 = vadd.f32 %v143, %v148
  %v212 = vadd.f32 %v144, %v148
  %v213 = vadd.f32 %v145, %v148
  %214 = vst [vmem:[%s3] sm:$0xff] %v150
  %215 = vst [vmem:[%s3 + $0x8] sm:$0xff] %v151
  %216 = vst [vmem:[%s3 + $0x10] sm:$0xff] %v152
  %217 = vst [vmem:[%s3 + $0x18] sm:$0xff] %v153
  %218 = vst [vmem:[%s3 + $0x20] sm:$0xff] %v154
  %219 = vst [vmem:[%s3 + $0x28] sm:$0xff] %v155
  %220 = vst [vmem:[%s3 + $0x30] sm:$0xff] %v156
  %221 = vst [vmem:[%s3 + $0x38] sm:$0xff] %v157
  %222 = vst [vmem:[%s3 + $0x40] sm:$0xff] %v158
  %223 = vst [vmem:[%s3 + $0x48] sm:$0xff] %v159
  %224 = vst [vmem:[%s3 + $0x50] sm:$0xff] %v160
  %225 = vst [vmem:[%s3 + $0x58] sm:$0xff] %v161
  %226 = vst [vmem:[%s3 + $0x60] sm:$0xff] %v162
  %227 = vst [vmem:[%s3 + $0x68] sm:$0xff] %v163
  %228 = vst [vmem:[%s3 + $0x70] sm:$0xff] %v164
  %229 = vst [vmem:[%s3 + $0x78] sm:$0xff] %v165
  %230 = vst [vmem:[%s3 + $0x80] sm:$0xff] %v166
  %231 = vst [vmem:[%s3 + $0x88] sm:$0xff] %v167
  %232 = vst [vmem:[%s3 + $0x90] sm:$0xff] %v168
  %233 = vst [vmem:[%s3 + $0x98] sm:$0xff] %v169
  %234 = vst [vmem:[%s3 + $0xa0] sm:$0xff] %v170
  %235 = vst [vmem:[%s3 + $0xa8] sm:$0xff] %v171
  %236 = vst [vmem:[%s3 + $0xb0] sm:$0xff] %v172
  %237 = vst [vmem:[%s3 + $0xb8] sm:$0xff] %v173
  %238 = vst [vmem:[%s3 + $0xc0] sm:$0xff] %v174
  %239 = vst [vmem:[%s3 + $0xc8] sm:$0xff] %v175
  %240 = vst [vmem:[%s3 + $0xd0] sm:$0xff] %v176
  %241 = vst [vmem:[%s3 + $0xd8] sm:$0xff] %v177
  %242 = vst [vmem:[%s3 + $0xe0] sm:$0xff] %v178
  %243 = vst [vmem:[%s3 + $0xe8] sm:$0xff] %v179
  %244 = vst [vmem:[%s3 + $0xf0] sm:$0xff] %v180
  %245 = vst [vmem:[%s3 + $0xf8] sm:$0xff] %v181
  %246 = vst [vmem:[%s3 + $0x100] sm:$0xff] %v182
  %247 = vst [vmem:[%s3 + $0x108] sm:$0xff] %v183
  %248 = vst [vmem:[%s3 + $0x110] sm:$0xff] %v184
  %249 = vst [vmem:[%s3 + $0x118] sm:$0xff] %v185
  %250 = vst [vmem:[%s3 + $0x120] sm:$0xff] %v186
  %251 = vst [vmem:[%s3 + $0x128] sm:$0xff] %v187
  %252 = vst [vmem:[%s3 + $0x130] sm:$0xff] %v188
  %253 = vst [vmem:[%s3 + $0x138] sm:$0xff] %v189
  %254 = vst [vmem:[%s3 + $0x140] sm:$0xff] %v190
  %255 = vst [vmem:[%s3 + $0x148] sm:$0xff] %v191
  %256 = vst [vmem:[%s3 + $0x150] sm:$0xff] %v192
  %257 = vst [vmem:[%s3 + $0x158] sm:$0xff] %v193
  %258 = vst [vmem:[%s3 + $0x160] sm:$0xff] %v194
  %259 = vst [vmem:[%s3 + $0x168] sm:$0xff] %v195
  %260 = vst [vmem:[%s3 + $0x170] sm:$0xff] %v196
  %261 = vst [vmem:[%s3 + $0x178] sm:$0xff] %v197
  %262 = vst [vmem:[%s3 + $0x180] sm:$0xff] %v198
  %263 = vst [vmem:[%s3 + $0x188] sm:$0xff] %v199
  %264 = vst [vmem:[%s3 + $0x190] sm:$0xff] %v200
  %265 = vst [vmem:[%s3 + $0x198] sm:$0xff] %v201
  %266 = vst [vmem:[%s3 + $0x1a0] sm:$0xff] %v202
  %267 = vst [vmem:[%s3 + $0x1a8] sm:$0xff] %v203
  %268 = vst [vmem:[%s3 + $0x1b0] sm:$0xff] %v204
  %269 = vst [vmem:[%s3 + $0x1b8] sm:$0xff] %v205
  %270 = vst [vmem:[%s3 + $0x1c0] sm:$0xff] %v206
  %271 = vst [vmem:[%s3 + $0x1c8] sm:$0xff] %v207
  %272 = vst [vmem:[%s3 + $0x1d0] sm:$0xff] %v208
  %273 = vst [vmem:[%s3 + $0x1d8] sm:$0xff] %v209
  %274 = vst [vmem:[%s3 + $0x1e0] sm:$0xff] %v210
  %275 = vst [vmem:[%s3 + $0x1e8] sm:$0xff] %v211
  %276 = vst [vmem:[%s3 + $0x1f0] sm:$0xff] %v212
  %277 = vst [vmem:[%s3 + $0x1f8] sm:$0xff] %v213
  // Predicated region
  $region14: #{conv_bn2d.3} parent=0 // pred_check
    _
  $region15: #{conv_bn2d.3} parent=0 // pred_check_branch
    %279 = sbr.rel (0) target = $region17
  $region16: #{conv_bn2d.3} parent=0 // pred_region
    _
  $region17: #{conv_bn2d.3} parent=0 // pred_fallthru
    _
  // Predicated region
  $region18: #{conv_bn2d.3} parent=0 // pred_check
    _
  $region19: #{conv_bn2d.3} parent=0 // pred_check_branch
    %281 = sbr.rel (0) target = $region21
  $region20: #{conv_bn2d.3} parent=0 // pred_region
    _
  $region21: #{conv_bn2d.3} parent=0 // pred_fallthru
    _

// kernel: conv_bn2d.2
$region0: #{conv_bn2d.2}
  #allocation0 [shape = 'u32[]', space=smem, size = 0x4, offset = 0x4, fixed_abs, tag = 'smem constant byte address 0x4 - core index']
  #allocation1 [shape = 'u32[72,128]{1,0:T(1,128)}', space=vmem, size = 0x9000, scoped, tag = 'internal scratch']
  %s0 = inlined_call_operand.vmem [shape: bf16[512,128], index: 0, kind: input, shape index: {}]
  %s1 = inlined_call_operand.vmem [shape: bf16[128,128], index: 1, kind: input, shape index: {}]
  %s2 = inlined_call_operand.vmem [shape: f32[512,128], index: 2, kind: output, shape index: {0}]
  %s3 = inlined_call_operand.vmem [shape: f32[1,8,128], index: 3, kind: output, shape index: {1}]
  %s4 = inlined_call_operand.vmem [shape: f32[1,8,128], index: 4, kind: output, shape index: {2}]
  %5 = xla_tuple %s2, %s3, %s4
  %s6 = sld [smem:[#allocation0]]
  $region34: #{conv_bn2d.2} parent=0
    _
  %s8 = ssub.s32 1, %s6
  %s9 = scalar_select 0, %s8, %s6
  // Predicated region
  $region2: #{conv_bn2d.2} parent=0 // pred_check
    _
  $region3: #{conv_bn2d.2} parent=0 // pred_check_branch
    %11 = sbr.rel (0) target = $region5
  $region4: #{conv_bn2d.2} parent=0 // pred_region
    _
  $region5: #{conv_bn2d.2} parent=0 // pred_fallthru
    _
  // Predicated region
  $region6: #{conv_bn2d.2} parent=0 // pred_check
    _
  $region7: #{conv_bn2d.2} parent=0 // pred_check_branch
    %13 = sbr.rel (0) target = $region9
  $region8: #{conv_bn2d.2} parent=0 // pred_region
    _
  $region9: #{conv_bn2d.2} parent=0 // pred_fallthru
    _
  %v14 = vld [vmem:[%s0] sm:$0xf]
  %v15 = vld [vmem:[%s0 + $0x4] sm:$0xf]
  %v16 = vld [vmem:[%s0 + $0x8] sm:$0xf]
  %v17 = vld [vmem:[%s0 + $0xc] sm:$0xf]
  %v18 = vld [vmem:[%s0 + $0x10] sm:$0xf]
  %v19 = vld [vmem:[%s0 + $0x14] sm:$0xf]
  %v20 = vld [vmem:[%s0 + $0x18] sm:$0xf]
  %v21 = vld [vmem:[%s0 + $0x1c] sm:$0xf]
  %v22 = vld [vmem:[%s0 + $0x20] sm:$0xf]
  %v23 = vld [vmem:[%s0 + $0x24] sm:$0xf]
  %v24 = vld [vmem:[%s0 + $0x28] sm:$0xf]
  %v25 = vld [vmem:[%s0 + $0x2c] sm:$0xf]
  %v26 = vld [vmem:[%s0 + $0x30] sm:$0xf]
  %v27 = vld [vmem:[%s0 + $0x34] sm:$0xf]
  %v28 = vld [vmem:[%s0 + $0x38] sm:$0xf]
  %v29 = vld [vmem:[%s0 + $0x3c] sm:$0xf]
  %v30 = vld [vmem:[%s0 + $0x40] sm:$0xf]
  %v31 = vld [vmem:[%s0 + $0x44] sm:$0xf]
  %v32 = vld [vmem:[%s0 + $0x48] sm:$0xf]
  %v33 = vld [vmem:[%s0 + $0x4c] sm:$0xf]
  %v34 = vld [vmem:[%s0 + $0x50] sm:$0xf]
  %v35 = vld [vmem:[%s0 + $0x54] sm:$0xf]
  %v36 = vld [vmem:[%s0 + $0x58] sm:$0xf]
  %v37 = vld [vmem:[%s0 + $0x5c] sm:$0xf]
  %v38 = vld [vmem:[%s0 + $0x60] sm:$0xf]
  %v39 = vld [vmem:[%s0 + $0x64] sm:$0xf]
  %v40 = vld [vmem:[%s0 + $0x68] sm:$0xf]
  %v41 = vld [vmem:[%s0 + $0x6c] sm:$0xf]
  %v42 = vld [vmem:[%s0 + $0x70] sm:$0xf]
  %v43 = vld [vmem:[%s0 + $0x74] sm:$0xf]
  %v44 = vld [vmem:[%s0 + $0x78] sm:$0xf]
  %v45 = vld [vmem:[%s0 + $0x7c] sm:$0xf]
  %v46 = vld [vmem:[%s0 + $0x80] sm:$0xf]
  %v47 = vld [vmem:[%s0 + $0x84] sm:$0xf]
  %v48 = vld [vmem:[%s0 + $0x88] sm:$0xf]
  %v49 = vld [vmem:[%s0 + $0x8c] sm:$0xf]
  %v50 = vld [vmem:[%s0 + $0x90] sm:$0xf]
  %v51 = vld [vmem:[%s0 + $0x94] sm:$0xf]
  %v52 = vld [vmem:[%s0 + $0x98] sm:$0xf]
  %v53 = vld [vmem:[%s0 + $0x9c] sm:$0xf]
  %v54 = vld [vmem:[%s0 + $0xa0] sm:$0xf]
  %v55 = vld [vmem:[%s0 + $0xa4] sm:$0xf]
  %v56 = vld [vmem:[%s0 + $0xa8] sm:$0xf]
  %v57 = vld [vmem:[%s0 + $0xac] sm:$0xf]
  %v58 = vld [vmem:[%s0 + $0xb0] sm:$0xf]
  %v59 = vld [vmem:[%s0 + $0xb4] sm:$0xf]
  %v60 = vld [vmem:[%s0 + $0xb8] sm:$0xf]
  %v61 = vld [vmem:[%s0 + $0xbc] sm:$0xf]
  %v62 = vld [vmem:[%s0 + $0xc0] sm:$0xf]
  %v63 = vld [vmem:[%s0 + $0xc4] sm:$0xf]
  %v64 = vld [vmem:[%s0 + $0xc8] sm:$0xf]
  %v65 = vld [vmem:[%s0 + $0xcc] sm:$0xf]
  %v66 = vld [vmem:[%s0 + $0xd0] sm:$0xf]
  %v67 = vld [vmem:[%s0 + $0xd4] sm:$0xf]
  %v68 = vld [vmem:[%s0 + $0xd8] sm:$0xf]
  %v69 = vld [vmem:[%s0 + $0xdc] sm:$0xf]
  %v70 = vld [vmem:[%s0 + $0xe0] sm:$0xf]
  %v71 = vld [vmem:[%s0 + $0xe4] sm:$0xf]
  %v72 = vld [vmem:[%s0 + $0xe8] sm:$0xf]
  %v73 = vld [vmem:[%s0 + $0xec] sm:$0xf]
  %v74 = vld [vmem:[%s0 + $0xf0] sm:$0xf]
  %v75 = vld [vmem:[%s0 + $0xf4] sm:$0xf]
  %v76 = vld [vmem:[%s0 + $0xf8] sm:$0xf]
  %v77 = vld [vmem:[%s0 + $0xfc] sm:$0xf]
  %v78 = vld [vmem:[%s1] sm:$0xf]
  %v79 = vld [vmem:[%s1 + $0x4] sm:$0xf]
  %v80 = vld [vmem:[%s1 + $0x8] sm:$0xf]
  %v81 = vld [vmem:[%s1 + $0xc] sm:$0xf]
  %v82 = vld [vmem:[%s1 + $0x10] sm:$0xf]
  %v83 = vld [vmem:[%s1 + $0x14] sm:$0xf]
  %v84 = vld [vmem:[%s1 + $0x18] sm:$0xf]
  %v85 = vld [vmem:[%s1 + $0x1c] sm:$0xf]
  %v86 = vld [vmem:[%s1 + $0x20] sm:$0xf]
  %v87 = vld [vmem:[%s1 + $0x24] sm:$0xf]
  %v88 = vld [vmem:[%s1 + $0x28] sm:$0xf]
  %v89 = vld [vmem:[%s1 + $0x2c] sm:$0xf]
  %v90 = vld [vmem:[%s1 + $0x30] sm:$0xf]
  %v91 = vld [vmem:[%s1 + $0x34] sm:$0xf]
  %v92 = vld [vmem:[%s1 + $0x38] sm:$0xf]
  %v93 = vld [vmem:[%s1 + $0x3c] sm:$0xf]
  %v158 = vunpack.c.l.b16 %v14
  %v159 = vunpack.c.l.b16 %v15
  %v160 = vunpack.c.l.b16 %v16
  %v161 = vunpack.c.l.b16 %v17
  %v162 = vunpack.c.l.b16 %v18
  %v163 = vunpack.c.l.b16 %v19
  %v164 = vunpack.c.l.b16 %v20
  %v165 = vunpack.c.l.b16 %v21
  %v166 = vunpack.c.l.b16 %v22
  %v167 = vunpack.c.l.b16 %v23
  %v168 = vunpack.c.l.b16 %v24
  %v169 = vunpack.c.l.b16 %v25
  %v170 = vunpack.c.l.b16 %v26
  %v171 = vunpack.c.l.b16 %v27
  %v172 = vunpack.c.l.b16 %v28
  %v173 = vunpack.c.l.b16 %v29
  %v174 = vunpack.c.l.b16 %v30
  %v175 = vunpack.c.l.b16 %v31
  %v176 = vunpack.c.l.b16 %v32
  %v177 = vunpack.c.l.b16 %v33
  %v178 = vunpack.c.l.b16 %v34
  %v179 = vunpack.c.l.b16 %v35
  %v180 = vunpack.c.l.b16 %v36
  %v181 = vunpack.c.l.b16 %v37
  %v182 = vunpack.c.l.b16 %v38
  %v183 = vunpack.c.l.b16 %v39
  %v184 = vunpack.c.l.b16 %v40
  %v185 = vunpack.c.l.b16 %v41
  %v186 = vunpack.c.l.b16 %v42
  %v187 = vunpack.c.l.b16 %v43
  %v188 = vunpack.c.l.b16 %v44
  %v189 = vunpack.c.l.b16 %v45
  %v190 = vunpack.c.l.b16 %v46
  %v191 = vunpack.c.l.b16 %v47
  %v192 = vunpack.c.l.b16 %v48
  %v193 = vunpack.c.l.b16 %v49
  %v194 = vunpack.c.l.b16 %v50
  %v195 = vunpack.c.l.b16 %v51
  %v196 = vunpack.c.l.b16 %v52
  %v197 = vunpack.c.l.b16 %v53
  %v198 = vunpack.c.l.b16 %v54
  %v199 = vunpack.c.l.b16 %v55
  %v200 = vunpack.c.l.b16 %v56
  %v201 = vunpack.c.l.b16 %v57
  %v202 = vunpack.c.l.b16 %v58
  %v203 = vunpack.c.l.b16 %v59
  %v204 = vunpack.c.l.b16 %v60
  %v205 = vunpack.c.l.b16 %v61
  %v206 = vunpack.c.l.b16 %v62
  %v207 = vunpack.c.l.b16 %v63
  %v208 = vunpack.c.l.b16 %v64
  %v209 = vunpack.c.l.b16 %v65
  %v210 = vunpack.c.l.b16 %v66
  %v211 = vunpack.c.l.b16 %v67
  %v212 = vunpack.c.l.b16 %v68
  %v213 = vunpack.c.l.b16 %v69
  %v214 = vunpack.c.l.b16 %v70
  %v215 = vunpack.c.l.b16 %v71
  %v216 = vunpack.c.l.b16 %v72
  %v217 = vunpack.c.l.b16 %v73
  %v218 = vunpack.c.l.b16 %v74
  %v219 = vunpack.c.l.b16 %v75
  %v220 = vunpack.c.l.b16 %v76
  %v221 = vunpack.c.l.b16 %v77
  %v222 = vpack.c.b16 %v159, %v158
  %v223 = vpack.c.b16 %v161, %v160
  %v224 = vpack.c.b16 %v163, %v162
  %v225 = vpack.c.b16 %v165, %v164
  %v226 = vpack.c.b16 %v167, %v166
  %v227 = vpack.c.b16 %v169, %v168
  %v228 = vpack.c.b16 %v171, %v170
  %v229 = vpack.c.b16 %v173, %v172
  %v230 = vpack.c.b16 %v175, %v174
  %v231 = vpack.c.b16 %v177, %v176
  %v232 = vpack.c.b16 %v179, %v178
  %v233 = vpack.c.b16 %v181, %v180
  %v234 = vpack.c.b16 %v183, %v182
  %v235 = vpack.c.b16 %v185, %v184
  %v236 = vpack.c.b16 %v187, %v186
  %v237 = vpack.c.b16 %v189, %v188
  %v238 = vpack.c.b16 %v191, %v190
  %v239 = vpack.c.b16 %v193, %v192
  %v240 = vpack.c.b16 %v195, %v194
  %v241 = vpack.c.b16 %v197, %v196
  %v242 = vpack.c.b16 %v199, %v198
  %v243 = vpack.c.b16 %v201, %v200
  %v244 = vpack.c.b16 %v203, %v202
  %v245 = vpack.c.b16 %v205, %v204
  %v246 = vpack.c.b16 %v207, %v206
  %v247 = vpack.c.b16 %v209, %v208
  %v248 = vpack.c.b16 %v211, %v210
  %v249 = vpack.c.b16 %v213, %v212
  %v250 = vpack.c.b16 %v215, %v214
  %v251 = vpack.c.b16 %v217, %v216
  %v252 = vpack.c.b16 %v219, %v218
  %v253 = vpack.c.b16 %v221, %v220
  %v302 = vunpack.c.l.b16 %v78
  %v303 = vunpack.c.l.b16 %v79
  %v304 = vunpack.c.l.b16 %v80
  %v305 = vunpack.c.l.b16 %v81
  %v306 = vunpack.c.l.b16 %v82
  %v307 = vunpack.c.l.b16 %v83
  %v308 = vunpack.c.l.b16 %v84
  %v309 = vunpack.c.l.b16 %v85
  %v310 = vunpack.c.l.b16 %v86
  %v311 = vunpack.c.l.b16 %v87
  %v312 = vunpack.c.l.b16 %v88
  %v313 = vunpack.c.l.b16 %v89
  %v314 = vunpack.c.l.b16 %v90
  %v315 = vunpack.c.l.b16 %v91
  %v316 = vunpack.c.l.b16 %v92
  %v317 = vunpack.c.l.b16 %v93
  %v318 = vpack.c.b16 %v303, %v302
  %v319 = vpack.c.b16 %v305, %v304
  %v320 = vpack.c.b16 %v307, %v306
  %v321 = vpack.c.b16 %v309, %v308
  %v322 = vpack.c.b16 %v311, %v310
  %v323 = vpack.c.b16 %v313, %v312
  %v324 = vpack.c.b16 %v315, %v314
  %v325 = vpack.c.b16 %v317, %v316
  %334 = vmatpush.bf16.msra.mxu0 %v325
  %335 = vmatpush.bf16.msra.mxu0 %v324
  %336 = vmatpush.bf16.msra.mxu0 %v323
  %337 = vmatpush.bf16.msra.mxu0 %v322
  %338 = vmatpush.bf16.msra.mxu0 %v321
  %339 = vmatpush.bf16.msra.mxu0 %v320
  %340 = vmatpush.bf16.msra.mxu0 %v319
  %341 = vmatpush.bf16.msra.mxu0 %v318
  %342 = vmatmul.bf16.gmra.mxu0 %v222
  %v343 = vpop.f32.mrf.mxu0
  %v344 = vadd.f32 0.0, %v343
  %v345 = vpop.f32.mrf.mxu0
  %v346 = vadd.f32 0.0, %v345
  %347 = vmatmul.bf16.gmra.mxu0 %v223
  %v348 = vpop.f32.mrf.mxu0
  %v349 = vadd.f32 0.0, %v348
  %v350 = vpop.f32.mrf.mxu0
  %v351 = vadd.f32 0.0, %v350
  %352 = vmatmul.bf16.gmra.mxu0 %v224
  %v353 = vpop.f32.mrf.mxu0
  %v354 = vadd.f32 0.0, %v353
  %v355 = vpop.f32.mrf.mxu0
  %v356 = vadd.f32 0.0, %v355
  %357 = vmatmul.bf16.gmra.mxu0 %v225
  %v358 = vpop.f32.mrf.mxu0
  %v359 = vadd.f32 0.0, %v358
  %v360 = vpop.f32.mrf.mxu0
  %v361 = vadd.f32 0.0, %v360
  %362 = vmatmul.bf16.gmra.mxu0 %v226
  %v363 = vpop.f32.mrf.mxu0
  %v364 = vadd.f32 0.0, %v363
  %v365 = vpop.f32.mrf.mxu0
  %v366 = vadd.f32 0.0, %v365
  %367 = vmatmul.bf16.gmra.mxu0 %v227
  %v368 = vpop.f32.mrf.mxu0
  %v369 = vadd.f32 0.0, %v368
  %v370 = vpop.f32.mrf.mxu0
  %v371 = vadd.f32 0.0, %v370
  %372 = vmatmul.bf16.gmra.mxu0 %v228
  %v373 = vpop.f32.mrf.mxu0
  %v374 = vadd.f32 0.0, %v373
  %v375 = vpop.f32.mrf.mxu0
  %v376 = vadd.f32 0.0, %v375
  %377 = vmatmul.bf16.gmra.mxu0 %v229
  %v378 = vpop.f32.mrf.mxu0
  %v379 = vadd.f32 0.0, %v378
  %v380 = vpop.f32.mrf.mxu0
  %v381 = vadd.f32 0.0, %v380
  %382 = vmatmul.bf16.gmra.mxu0 %v230
  %v383 = vpop.f32.mrf.mxu0
  %v384 = vadd.f32 0.0, %v383
  %v385 = vpop.f32.mrf.mxu0
  %v386 = vadd.f32 0.0, %v385
  %387 = vmatmul.bf16.gmra.mxu0 %v231
  %v388 = vpop.f32.mrf.mxu0
  %v389 = vadd.f32 0.0, %v388
  %v390 = vpop.f32.mrf.mxu0
  %v391 = vadd.f32 0.0, %v390
  %392 = vmatmul.bf16.gmra.mxu0 %v232
  %v393 = vpop.f32.mrf.mxu0
  %v394 = vadd.f32 0.0, %v393
  %v395 = vpop.f32.mrf.mxu0
  %v396 = vadd.f32 0.0, %v395
  %397 = vmatmul.bf16.gmra.mxu0 %v233
  %v398 = vpop.f32.mrf.mxu0
  %v399 = vadd.f32 0.0, %v398
  %v400 = vpop.f32.mrf.mxu0
  %v401 = vadd.f32 0.0, %v400
  %402 = vmatmul.bf16.gmra.mxu0 %v234
  %v403 = vpop.f32.mrf.mxu0
  %v404 = vadd.f32 0.0, %v403
  %v405 = vpop.f32.mrf.mxu0
  %v406 = vadd.f32 0.0, %v405
  %407 = vmatmul.bf16.gmra.mxu0 %v235
  %v408 = vpop.f32.mrf.mxu0
  %v409 = vadd.f32 0.0, %v408
  %v410 = vpop.f32.mrf.mxu0
  %v411 = vadd.f32 0.0, %v410
  %412 = vmatmul.bf16.gmra.mxu0 %v236
  %v413 = vpop.f32.mrf.mxu0
  %v414 = vadd.f32 0.0, %v413
  %v415 = vpop.f32.mrf.mxu0
  %v416 = vadd.f32 0.0, %v415
  %417 = vmatmul.bf16.gmra.mxu0 %v237
  %v418 = vpop.f32.mrf.mxu0
  %v419 = vadd.f32 0.0, %v418
  %v420 = vpop.f32.mrf.mxu0
  %v421 = vadd.f32 0.0, %v420
  %422 = vmatmul.bf16.gmra.mxu0 %v238
  %v423 = vpop.f32.mrf.mxu0
  %v424 = vadd.f32 0.0, %v423
  %v425 = vpop.f32.mrf.mxu0
  %v426 = vadd.f32 0.0, %v425
  %427 = vmatmul.bf16.gmra.mxu0 %v239
  %v428 = vpop.f32.mrf.mxu0
  %v429 = vadd.f32 0.0, %v428
  %v430 = vpop.f32.mrf.mxu0
  %v431 = vadd.f32 0.0, %v430
  %432 = vmatmul.bf16.gmra.mxu0 %v240
  %v433 = vpop.f32.mrf.mxu0
  %v434 = vadd.f32 0.0, %v433
  %v435 = vpop.f32.mrf.mxu0
  %v436 = vadd.f32 0.0, %v435
  %437 = vmatmul.bf16.gmra.mxu0 %v241
  %v438 = vpop.f32.mrf.mxu0
  %v439 = vadd.f32 0.0, %v438
  %v440 = vpop.f32.mrf.mxu0
  %v441 = vadd.f32 0.0, %v440
  %442 = vmatmul.bf16.gmra.mxu0 %v242
  %v443 = vpop.f32.mrf.mxu0
  %v444 = vadd.f32 0.0, %v443
  %v445 = vpop.f32.mrf.mxu0
  %v446 = vadd.f32 0.0, %v445
  %447 = vmatmul.bf16.gmra.mxu0 %v243
  %v448 = vpop.f32.mrf.mxu0
  %v449 = vadd.f32 0.0, %v448
  %v450 = vpop.f32.mrf.mxu0
  %v451 = vadd.f32 0.0, %v450
  %452 = vmatmul.bf16.gmra.mxu0 %v244
  %v453 = vpop.f32.mrf.mxu0
  %v454 = vadd.f32 0.0, %v453
  %v455 = vpop.f32.mrf.mxu0
  %v456 = vadd.f32 0.0, %v455
  %457 = vmatmul.bf16.gmra.mxu0 %v245
  %v458 = vpop.f32.mrf.mxu0
  %v459 = vadd.f32 0.0, %v458
  %v460 = vpop.f32.mrf.mxu0
  %v461 = vadd.f32 0.0, %v460
  %462 = vmatmul.bf16.gmra.mxu0 %v246
  %v463 = vpop.f32.mrf.mxu0
  %v464 = vadd.f32 0.0, %v463
  %v465 = vpop.f32.mrf.mxu0
  %v466 = vadd.f32 0.0, %v465
  %467 = vmatmul.bf16.gmra.mxu0 %v247
  %v468 = vpop.f32.mrf.mxu0
  %v469 = vadd.f32 0.0, %v468
  %v470 = vpop.f32.mrf.mxu0
  %v471 = vadd.f32 0.0, %v470
  %472 = vmatmul.bf16.gmra.mxu0 %v248
  %v473 = vpop.f32.mrf.mxu0
  %v474 = vadd.f32 0.0, %v473
  %v475 = vpop.f32.mrf.mxu0
  %v476 = vadd.f32 0.0, %v475
  %477 = vmatmul.bf16.gmra.mxu0 %v249
  %v478 = vpop.f32.mrf.mxu0
  %v479 = vadd.f32 0.0, %v478
  %v480 = vpop.f32.mrf.mxu0
  %v481 = vadd.f32 0.0, %v480
  %482 = vmatmul.bf16.gmra.mxu0 %v250
  %v483 = vpop.f32.mrf.mxu0
  %v484 = vadd.f32 0.0, %v483
  %v485 = vpop.f32.mrf.mxu0
  %v486 = vadd.f32 0.0, %v485
  %487 = vmatmul.bf16.gmra.mxu0 %v251
  %v488 = vpop.f32.mrf.mxu0
  %v489 = vadd.f32 0.0, %v488
  %v490 = vpop.f32.mrf.mxu0
  %v491 = vadd.f32 0.0, %v490
  %492 = vmatmul.bf16.gmra.mxu0 %v252
  %v493 = vpop.f32.mrf.mxu0
  %v494 = vadd.f32 0.0, %v493
  %v495 = vpop.f32.mrf.mxu0
  %v496 = vadd.f32 0.0, %v495
  %497 = vmatmul.bf16.gmra.mxu0 %v253
  %v498 = vpop.f32.mrf.mxu0
  %v499 = vadd.f32 0.0, %v498
  %v500 = vpop.f32.mrf.mxu0
  %v501 = vadd.f32 0.0, %v500
  %502 = vdwg.mxu0
  %503 = vst [vmem:[%s2] sm:$0xff] %v344
  %504 = vst [vmem:[%s2 + $0x8] sm:$0xff] %v346
  %505 = vst [vmem:[%s2 + $0x10] sm:$0xff] %v349
  %506 = vst [vmem:[%s2 + $0x18] sm:$0xff] %v351
  %507 = vst [vmem:[%s2 + $0x20] sm:$0xff] %v354
  %508 = vst [vmem:[%s2 + $0x28] sm:$0xff] %v356
  %509 = vst [vmem:[%s2 + $0x30] sm:$0xff] %v359
  %510 = vst [vmem:[%s2 + $0x38] sm:$0xff] %v361
  %511 = vst [vmem:[%s2 + $0x40] sm:$0xff] %v364
  %512 = vst [vmem:[%s2 + $0x48] sm:$0xff] %v366
  %513 = vst [vmem:[%s2 + $0x50] sm:$0xff] %v369
  %514 = vst [vmem:[%s2 + $0x58] sm:$0xff] %v371
  %515 = vst [vmem:[%s2 + $0x60] sm:$0xff] %v374
  %516 = vst [vmem:[%s2 + $0x68] sm:$0xff] %v376
  %517 = vst [vmem:[%s2 + $0x70] sm:$0xff] %v379
  %518 = vst [vmem:[%s2 + $0x78] sm:$0xff] %v381
  %519 = vst [vmem:[%s2 + $0x80] sm:$0xff] %v384
  %520 = vst [vmem:[%s2 + $0x88] sm:$0xff] %v386
  %521 = vst [vmem:[%s2 + $0x90] sm:$0xff] %v389
  %522 = vst [vmem:[%s2 + $0x98] sm:$0xff] %v391
  %523 = vst [vmem:[%s2 + $0xa0] sm:$0xff] %v394
  %524 = vst [vmem:[%s2 + $0xa8] sm:$0xff] %v396
  %525 = vst [vmem:[%s2 + $0xb0] sm:$0xff] %v399
  %526 = vst [vmem:[%s2 + $0xb8] sm:$0xff] %v401
  %527 = vst [vmem:[%s2 + $0xc0] sm:$0xff] %v404
  %528 = vst [vmem:[%s2 + $0xc8] sm:$0xff] %v406
  %529 = vst [vmem:[%s2 + $0xd0] sm:$0xff] %v409
  %530 = vst [vmem:[%s2 + $0xd8] sm:$0xff] %v411
  %531 = vst [vmem:[%s2 + $0xe0] sm:$0xff] %v414
  %532 = vst [vmem:[%s2 + $0xe8] sm:$0xff] %v416
  %533 = vst [vmem:[%s2 + $0xf0] sm:$0xff] %v419
  %534 = vst [vmem:[%s2 + $0xf8] sm:$0xff] %v421
  %535 = vst [vmem:[%s2 + $0x100] sm:$0xff] %v424
  %536 = vst [vmem:[%s2 + $0x108] sm:$0xff] %v426
  %537 = vst [vmem:[%s2 + $0x110] sm:$0xff] %v429
  %538 = vst [vmem:[%s2 + $0x118] sm:$0xff] %v431
  %539 = vst [vmem:[%s2 + $0x120] sm:$0xff] %v434
  %540 = vst [vmem:[%s2 + $0x128] sm:$0xff] %v436
  %541 = vst [vmem:[%s2 + $0x130] sm:$0xff] %v439
  %542 = vst [vmem:[%s2 + $0x138] sm:$0xff] %v441
  %543 = vst [vmem:[%s2 + $0x140] sm:$0xff] %v444
  %544 = vst [vmem:[%s2 + $0x148] sm:$0xff] %v446
  %545 = vst [vmem:[%s2 + $0x150] sm:$0xff] %v449
  %546 = vst [vmem:[%s2 + $0x158] sm:$0xff] %v451
  %547 = vst [vmem:[%s2 + $0x160] sm:$0xff] %v454
  %548 = vst [vmem:[%s2 + $0x168] sm:$0xff] %v456
  %549 = vst [vmem:[%s2 + $0x170] sm:$0xff] %v459
  %550 = vst [vmem:[%s2 + $0x178] sm:$0xff] %v461
  %551 = vst [vmem:[%s2 + $0x180] sm:$0xff] %v464
  %552 = vst [vmem:[%s2 + $0x188] sm:$0xff] %v466
  %553 = vst [vmem:[%s2 + $0x190] sm:$0xff] %v469
  %554 = vst [vmem:[%s2 + $0x198] sm:$0xff] %v471
  %555 = vst [vmem:[%s2 + $0x1a0] sm:$0xff] %v474
  %556 = vst [vmem:[%s2 + $0x1a8] sm:$0xff] %v476
  %557 = vst [vmem:[%s2 + $0x1b0] sm:$0xff] %v479
  %558 = vst [vmem:[%s2 + $0x1b8] sm:$0xff] %v481
  %559 = vst [vmem:[%s2 + $0x1c0] sm:$0xff] %v484
  %560 = vst [vmem:[%s2 + $0x1c8] sm:$0xff] %v486
  %561 = vst [vmem:[%s2 + $0x1d0] sm:$0xff] %v489
  %562 = vst [vmem:[%s2 + $0x1d8] sm:$0xff] %v491
  %563 = vst [vmem:[%s2 + $0x1e0] sm:$0xff] %v494
  %564 = vst [vmem:[%s2 + $0x1e8] sm:$0xff] %v496
  %565 = vst [vmem:[%s2 + $0x1f0] sm:$0xff] %v499
  %566 = vst [vmem:[%s2 + $0x1f8] sm:$0xff] %v501
  %567 = vmatpush.msra.mxu0 %v381
  %568 = vmatpush.msra.mxu0 %v379
  %569 = vmatpush.msra.mxu0 %v376
  %570 = vmatpush.msra.mxu0 %v374
  %571 = vmatpush.msra.mxu0 %v371
  %572 = vmatpush.msra.mxu0 %v369
  %573 = vmatpush.msra.mxu0 %v366
  %574 = vmatpush.msra.mxu0 %v364
  %575 = vmatpush.msra.mxu0 %v361
  %576 = vmatpush.msra.mxu0 %v359
  %577 = vmatpush.msra.mxu0 %v356
  %578 = vmatpush.msra.mxu0 %v354
  %579 = vmatpush.msra.mxu0 %v351
  %580 = vmatpush.msra.mxu0 %v349
  %581 = vmatpush.msra.mxu0 %v346
  %582 = vmatpush.msra.mxu0 %v344
  %583 = vmatmul.f32.gmra.mxu0 1.0
  %v584 = vpop.f32.mrf.mxu0
  %v585 = vadd.f32 0.0, %v584
  %586 = vdwg.mxu0
  %587 = vmatpush.msra.mxu0 %v421
  %588 = vmatpush.msra.mxu0 %v419
  %589 = vmatpush.msra.mxu0 %v416
  %590 = vmatpush.msra.mxu0 %v414
  %591 = vmatpush.msra.mxu0 %v411
  %592 = vmatpush.msra.mxu0 %v409
  %593 = vmatpush.msra.mxu0 %v406
  %594 = vmatpush.msra.mxu0 %v404
  %595 = vmatpush.msra.mxu0 %v401
  %596 = vmatpush.msra.mxu0 %v399
  %597 = vmatpush.msra.mxu0 %v396
  %598 = vmatpush.msra.mxu0 %v394
  %599 = vmatpush.msra.mxu0 %v391
  %600 = vmatpush.msra.mxu0 %v389
  %601 = vmatpush.msra.mxu0 %v386
  %602 = vmatpush.msra.mxu0 %v384
  %603 = vmatmul.f32.gmra.mxu0 1.0
  %v604 = vpop.f32.mrf.mxu0
  %v605 = vadd.f32 %v585, %v604
  %606 = vdwg.mxu0
  %607 = vmatpush.msra.mxu0 %v461
  %608 = vmatpush.msra.mxu0 %v459
  %609 = vmatpush.msra.mxu0 %v456
  %610 = vmatpush.msra.mxu0 %v454
  %611 = vmatpush.msra.mxu0 %v451
  %612 = vmatpush.msra.mxu0 %v449
  %613 = vmatpush.msra.mxu0 %v446
  %614 = vmatpush.msra.mxu0 %v444
  %615 = vmatpush.msra.mxu0 %v441
  %616 = vmatpush.msra.mxu0 %v439
  %617 = vmatpush.msra.mxu0 %v436
  %618 = vmatpush.msra.mxu0 %v434
  %619 = vmatpush.msra.mxu0 %v431
  %620 = vmatpush.msra.mxu0 %v429
  %621 = vmatpush.msra.mxu0 %v426
  %622 = vmatpush.msra.mxu0 %v424
  %623 = vmatmul.f32.gmra.mxu0 1.0
  %v624 = vpop.f32.mrf.mxu0
  %v625 = vadd.f32 %v605, %v624
  %626 = vdwg.mxu0
  %627 = vmatpush.msra.mxu0 %v501
  %628 = vmatpush.msra.mxu0 %v499
  %629 = vmatpush.msra.mxu0 %v496
  %630 = vmatpush.msra.mxu0 %v494
  %631 = vmatpush.msra.mxu0 %v491
  %632 = vmatpush.msra.mxu0 %v489
  %633 = vmatpush.msra.mxu0 %v486
  %634 = vmatpush.msra.mxu0 %v484
  %635 = vmatpush.msra.mxu0 %v481
  %636 = vmatpush.msra.mxu0 %v479
  %637 = vmatpush.msra.mxu0 %v476
  %638 = vmatpush.msra.mxu0 %v474
  %639 = vmatpush.msra.mxu0 %v471
  %640 = vmatpush.msra.mxu0 %v469
  %641 = vmatpush.msra.mxu0 %v466
  %642 = vmatpush.msra.mxu0 %v464
  %643 = vmatmul.f32.gmra.mxu0 1.0
  %v644 = vpop.f32.mrf.mxu0
  %v645 = vadd.f32 %v625, %v644
  %646 = vdwg.mxu0
  %v647 = vmul.f32 %v344, %v344
  %v648 = vmul.f32 %v346, %v346
  %v649 = vmul.f32 %v349, %v349
  %v650 = vmul.f32 %v351, %v351
  %v651 = vmul.f32 %v354, %v354
  %v652 = vmul.f32 %v356, %v356
  %v653 = vmul.f32 %v359, %v359
  %v654 = vmul.f32 %v361, %v361
  %v655 = vmul.f32 %v364, %v364
  %v656 = vmul.f32 %v366, %v366
  %v657 = vmul.f32 %v369, %v369
  %v658 = vmul.f32 %v371, %v371
  %v659 = vmul.f32 %v374, %v374
  %v660 = vmul.f32 %v376, %v376
  %v661 = vmul.f32 %v379, %v379
  %v662 = vmul.f32 %v381, %v381
  %v663 = vmul.f32 %v384, %v384
  %v664 = vmul.f32 %v386, %v386
  %v665 = vmul.f32 %v389, %v389
  %v666 = vmul.f32 %v391, %v391
  %v667 = vmul.f32 %v394, %v394
  %v668 = vmul.f32 %v396, %v396
  %v669 = vmul.f32 %v399, %v399
  %v670 = vmul.f32 %v401, %v401
  %v671 = vmul.f32 %v404, %v404
  %v672 = vmul.f32 %v406, %v406
  %v673 = vmul.f32 %v409, %v409
  %v674 = vmul.f32 %v411, %v411
  %v675 = vmul.f32 %v414, %v414
  %v676 = vmul.f32 %v416, %v416
  %v677 = vmul.f32 %v419, %v419
  %v678 = vmul.f32 %v421, %v421
  %v679 = vmul.f32 %v424, %v424
  %v680 = vmul.f32 %v426, %v426
  %v681 = vmul.f32 %v429, %v429
  %v682 = vmul.f32 %v431, %v431
  %v683 = vmul.f32 %v434, %v434
  %v684 = vmul.f32 %v436, %v436
  %v685 = vmul.f32 %v439, %v439
  %v686 = vmul.f32 %v441, %v441
  %v687 = vmul.f32 %v444, %v444
  %v688 = vmul.f32 %v446, %v446
  %v689 = vmul.f32 %v449, %v449
  %v690 = vmul.f32 %v451, %v451
  %v691 = vmul.f32 %v454, %v454
  %v692 = vmul.f32 %v456, %v456
  %v693 = vmul.f32 %v459, %v459
  %v694 = vmul.f32 %v461, %v461
  %v695 = vmul.f32 %v464, %v464
  %v696 = vmul.f32 %v466, %v466
  %v697 = vmul.f32 %v469, %v469
  %v698 = vmul.f32 %v471, %v471
  %v699 = vmul.f32 %v474, %v474
  %v700 = vmul.f32 %v476, %v476
  %v701 = vmul.f32 %v479, %v479
  %v702 = vmul.f32 %v481, %v481
  %v703 = vmul.f32 %v484, %v484
  %v704 = vmul.f32 %v486, %v486
  %v705 = vmul.f32 %v489, %v489
  %v706 = vmul.f32 %v491, %v491
  %v707 = vmul.f32 %v494, %v494
  %v708 = vmul.f32 %v496, %v496
  %v709 = vmul.f32 %v499, %v499
  %v710 = vmul.f32 %v501, %v501
  %711 = vmatpush.msra.mxu0 %v662
  %712 = vmatpush.msra.mxu0 %v661
  %713 = vmatpush.msra.mxu0 %v660
  %714 = vmatpush.msra.mxu0 %v659
  %715 = vmatpush.msra.mxu0 %v658
  %716 = vmatpush.msra.mxu0 %v657
  %717 = vmatpush.msra.mxu0 %v656
  %718 = vmatpush.msra.mxu0 %v655
  %719 = vmatpush.msra.mxu0 %v654
  %720 = vmatpush.msra.mxu0 %v653
  %721 = vmatpush.msra.mxu0 %v652
  %722 = vmatpush.msra.mxu0 %v651
  %723 = vmatpush.msra.mxu0 %v650
  %724 = vmatpush.msra.mxu0 %v649
  %725 = vmatpush.msra.mxu0 %v648
  %726 = vmatpush.msra.mxu0 %v647
  %727 = vmatmul.f32.gmra.mxu0 1.0
  %v728 = vpop.f32.mrf.mxu0
  %v729 = vadd.f32 0.0, %v728
  %730 = vdwg.mxu0
  %731 = vmatpush.msra.mxu0 %v678
  %732 = vmatpush.msra.mxu0 %v677
  %733 = vmatpush.msra.mxu0 %v676
  %734 = vmatpush.msra.mxu0 %v675
  %735 = vmatpush.msra.mxu0 %v674
  %736 = vmatpush.msra.mxu0 %v673
  %737 = vmatpush.msra.mxu0 %v672
  %738 = vmatpush.msra.mxu0 %v671
  %739 = vmatpush.msra.mxu0 %v670
  %740 = vmatpush.msra.mxu0 %v669
  %741 = vmatpush.msra.mxu0 %v668
  %742 = vmatpush.msra.mxu0 %v667
  %743 = vmatpush.msra.mxu0 %v666
  %744 = vmatpush.msra.mxu0 %v665
  %745 = vmatpush.msra.mxu0 %v664
  %746 = vmatpush.msra.mxu0 %v663
  %747 = vmatmul.f32.gmra.mxu0 1.0
  %v748 = vpop.f32.mrf.mxu0
  %v749 = vadd.f32 %v729, %v748
  %750 = vdwg.mxu0
  %751 = vmatpush.msra.mxu0 %v694
  %752 = vmatpush.msra.mxu0 %v693
  %753 = vmatpush.msra.mxu0 %v692
  %754 = vmatpush.msra.mxu0 %v691
  %755 = vmatpush.msra.mxu0 %v690
  %756 = vmatpush.msra.mxu0 %v689
  %757 = vmatpush.msra.mxu0 %v688
  %758 = vmatpush.msra.mxu0 %v687
  %759 = vmatpush.msra.mxu0 %v686
  %760 = vmatpush.msra.mxu0 %v685
  %761 = vmatpush.msra.mxu0 %v684
  %762 = vmatpush.msra.mxu0 %v683
  %763 = vmatpush.msra.mxu0 %v682
  %764 = vmatpush.msra.mxu0 %v681
  %765 = vmatpush.msra.mxu0 %v680
  %766 = vmatpush.msra.mxu0 %v679
  %767 = vmatmul.f32.gmra.mxu0 1.0
  %v768 = vpop.f32.mrf.mxu0
  %v769 = vadd.f32 %v749, %v768
  %770 = vdwg.mxu0
  %771 = vmatpush.msra.mxu0 %v710
  %772 = vmatpush.msra.mxu0 %v709
  %773 = vmatpush.msra.mxu0 %v708
  %774 = vmatpush.msra.mxu0 %v707
  %775 = vmatpush.msra.mxu0 %v706
  %776 = vmatpush.msra.mxu0 %v705
  %777 = vmatpush.msra.mxu0 %v704
  %778 = vmatpush.msra.mxu0 %v703
  %779 = vmatpush.msra.mxu0 %v702
  %780 = vmatpush.msra.mxu0 %v701
  %781 = vmatpush.msra.mxu0 %v700
  %782 = vmatpush.msra.mxu0 %v699
  %783 = vmatpush.msra.mxu0 %v698
  %784 = vmatpush.msra.mxu0 %v697
  %785 = vmatpush.msra.mxu0 %v696
  %786 = vmatpush.msra.mxu0 %v695
  %787 = vmatmul.f32.gmra.mxu0 1.0
  %v788 = vpop.f32.mrf.mxu0
  %v789 = vadd.f32 %v769, %v788
  %790 = vdwg.mxu0
  %791 = vst [vmem:[%s3] sm:$0xff] %v645
  %792 = vst [vmem:[%s4] sm:$0xff] %v789
  // Predicated region
  $region10: #{conv_bn2d.2} parent=0 // pred_check
    _
  $region11: #{conv_bn2d.2} parent=0 // pred_check_branch
    %794 = sbr.rel (0) target = $region13
  $region12: #{conv_bn2d.2} parent=0 // pred_region
    _
  $region13: #{conv_bn2d.2} parent=0 // pred_fallthru
    _
  // Predicated region
  $region14: #{conv_bn2d.2} parent=0 // pred_check
    _
  $region15: #{conv_bn2d.2} parent=0 // pred_check_branch
    %796 = sbr.rel (0) target = $region17
  $region16: #{conv_bn2d.2} parent=0 // pred_region
    _
  $region17: #{conv_bn2d.2} parent=0 // pred_fallthru
    _
  // Predicated region
  $region18: #{conv_bn2d.2} parent=0 // pred_check
    _
  $region19: #{conv_bn2d.2} parent=0 // pred_check_branch
    %798 = sbr.rel (0) target = $region21
  $region20: #{conv_bn2d.2} parent=0 // pred_region
    _
  $region21: #{conv_bn2d.2} parent=0 // pred_fallthru
    _
  // Predicated region
  $region22: #{conv_bn2d.2} parent=0 // pred_check
    _
  $region23: #{conv_bn2d.2} parent=0 // pred_check_branch
    %800 = sbr.rel (0) target = $region25
  $region24: #{conv_bn2d.2} parent=0 // pred_region
    _
  $region25: #{conv_bn2d.2} parent=0 // pred_fallthru
    _
  // Predicated region
  $region26: #{conv_bn2d.2} parent=0 // pred_check
    _
  $region27: #{conv_bn2d.2} parent=0 // pred_check_branch
    %802 = sbr.rel (0) target = $region29
  $region28: #{conv_bn2d.2} parent=0 // pred_region
    _
  $region29: #{conv_bn2d.2} parent=0 // pred_fallthru
    _
  // Predicated region
  $region30: #{conv_bn2d.2} parent=0 // pred_check
    _
  $region31: #{conv_bn2d.2} parent=0 // pred_check_branch
    %804 = sbr.rel (0) target = $region33
  $region32: #{conv_bn2d.2} parent=0 // pred_region
    _
  $region33: #{conv_bn2d.2} parent=0 // pred_fallthru
    _

</llo_original>
